<compile_context>
chip_gen: v7x
topology: tpu7x:2x2x1
jax: 0.10.0
libtpu: 0.0.40
codegen_flags: <defaults>
</compile_context>

<pallas_src>
import functools

import jax
import jax.numpy as jnp
import numpy as np
from jax.experimental import pallas as pl
from jax.experimental.pallas import tpu as pltpu

_LANES = 128
_SUBLANES = 8


def _focal_loss_kernel(yp_ref, yt_ref, out_ref, *, num_classes, alpha, gamma,
                       epsilon):
    # yp_ref block: (1, C, TR, 128)   logits (native dtype)
    # yt_ref block: (1, TR, 128)      int32 labels (-1 == padding)
    # out_ref block: (8, 128)         lane-dense per-block partial loss sum
    labels = yt_ref[0]                                        # (TR, 128) int32
    x = [yp_ref[0, c].astype(jnp.float32) for c in range(num_classes)]

    # Numerically stable softmax probability of the *true* class only.
    m = x[0]
    for c in range(1, num_classes):
        m = jnp.maximum(m, x[c])
    e = [jnp.exp(xc - m) for xc in x]                         # C exps (EUP)
    s = e[0]
    for c in range(1, num_classes):
        s = s + e[c]
    e_t = e[0]
    for c in range(1, num_classes):
        e_t = jnp.where(labels == c, e[c], e_t)
    p_t = jnp.clip(e_t / s, epsilon, 1.0 - epsilon)

    ce = -jnp.log(p_t)                                        # 1 log (EUP)
    one_minus = 1.0 - p_t
    g = float(gamma)
    if g == 1.0:
        modular = one_minus
    elif g.is_integer() and 1.0 < g <= 8.0:
        modular = one_minus                                   # gamma=2 -> 1 VPU mul
        for _ in range(int(g) - 1):
            modular = modular * one_minus
    else:
        modular = jnp.power(one_minus, g)

    if isinstance(alpha, tuple):                              # per-class alpha
        alpha_t = jnp.full_like(p_t, float(alpha[0]))
        for c in range(1, num_classes):
            alpha_t = jnp.where(labels == c, jnp.float32(alpha[c]), alpha_t)
    else:                                                     # scalar alpha
        alpha_t = jnp.float32(alpha)

    loss_px = alpha_t * modular * ce                          # (TR, 128)
    loss_px = jnp.where(labels >= 0, loss_px, 0.0)            # mask padding

    # Reduce (TR, 128) -> one lane-dense (8, 128) partial (pure VPU adds).
    tr = loss_px.shape[0]
    out_ref[...] = loss_px.reshape(tr // _SUBLANES, _SUBLANES, _LANES).sum(axis=0)


def categorical_focal_loss(y_pred, y_true, *, num_classes=3, alpha=0.25,
                           gamma=2.0, epsilon=1e-7, block_rows=512):
    """y_pred: [B, C, H, W] float logits (NCHW); y_true: [B, H, W] int labels.

    block_rows: pixel-tile height in 128-lane rows (multiple of 8).  Default
    512 rows = 64K pixels per block (~1 MiB double-buffered inputs at C=3,
    f32) — safely inside the scoped VMEM of v5e/v6e/v7x.
    """
    B, C, H, W = y_pred.shape
    assert C == num_classes
    P = H * W

    # --- pixel-axis tiling / padding (all static Python ints) -------------
    rows = -(-P // _LANES)                                   # ceil(P / 128)
    rows8 = -(-rows // _SUBLANES) * _SUBLANES                # pad to mult of 8
    block = min(int(block_rows), rows8)
    block = max(_SUBLANES, (block // _SUBLANES) * _SUBLANES)
    grid_r = -(-rows8 // block)
    rows_pad = grid_r * block
    P_pad = rows_pad * _LANES

    yp = y_pred.reshape(B, C, P)                             # keep native dtype
    yt = y_true.reshape(B, P).astype(jnp.int32)
    if P_pad != P:
        yp = jnp.pad(yp, ((0, 0), (0, 0), (0, P_pad - P)))
        yt = jnp.pad(yt, ((0, 0), (0, P_pad - P)), constant_values=-1)
    yp = yp.reshape(B, C, rows_pad, _LANES)
    yt = yt.reshape(B, rows_pad, _LANES)

    if isinstance(alpha, (list, tuple, np.ndarray)):
        alpha_arg = tuple(float(a) for a in np.asarray(alpha).reshape(-1))
        assert len(alpha_arg) == num_classes
    else:
        alpha_arg = float(alpha)

    kernel = functools.partial(
        _focal_loss_kernel,
        num_classes=C,
        alpha=alpha_arg,
        gamma=float(gamma),
        epsilon=float(epsilon),
    )

    partials = pl.pallas_call(
        kernel,
        out_shape=jax.ShapeDtypeStruct((_SUBLANES, B * grid_r * _LANES),
                                       jnp.float32),
        grid=(B, grid_r),
        in_specs=[
            pl.BlockSpec((1, C, block, _LANES), lambda b, r: (b, 0, r, 0)),
            pl.BlockSpec((1, block, _LANES), lambda b, r: (b, r, 0)),
        ],
        out_specs=pl.BlockSpec((_SUBLANES, _LANES),
                               lambda b, r: (0, b * grid_r + r)),
        compiler_params=pltpu.CompilerParams(
            dimension_semantics=("parallel", "parallel")),
    )(yp, yt)

    # Final reduction + mean over the (B, H, W) loss map in the wrapper.
    return jnp.sum(partials) / jnp.float32(B * H * W)


def _reference_focal_loss(y_pred, y_true, *, num_classes=3, alpha=0.25,
                          gamma=2.0, epsilon=1e-7):
    """Pure-JAX reference matching the PyTorch module exactly."""
    p = jax.nn.softmax(y_pred.astype(jnp.float32), axis=1)
    p = jnp.clip(p, epsilon, 1.0 - epsilon)
    oh = jax.nn.one_hot(y_true, num_classes, dtype=p.dtype)      # (B,H,W,C)
    oh = jnp.transpose(oh, (0, 3, 1, 2))                         # (B,C,H,W)
    ce = -oh * jnp.log(p)
    if isinstance(alpha, (list, tuple, np.ndarray)):
        a = jnp.asarray(alpha, dtype=p.dtype).reshape(1, -1, 1, 1)
    else:
        a = alpha
    focal = a * jnp.power(1.0 - p, gamma) * ce
    loss = jnp.sum(focal, axis=1)                                # (B,H,W)
    return jnp.mean(loss)


if __name__ == "__main__":
    num_classes = 3
    B, H, W = 2, 16, 16

    key = jax.random.PRNGKey(0)
    k_pred, k_true = jax.random.split(key)
    y_pred = jax.random.normal(k_pred, (B, num_classes, H, W), dtype=jnp.float32)
    y_true = jax.random.randint(k_true, (B, H, W), 0, num_classes, dtype=jnp.int32)

    loss = categorical_focal_loss(y_pred, y_true, num_classes=num_classes)
    loss = jax.block_until_ready(loss)

    ref = _reference_focal_loss(y_pred, y_true, num_classes=num_classes)
    np.testing.assert_allclose(np.asarray(loss), np.asarray(ref),
                               rtol=1e-5, atol=1e-6)

    print("KERNEL_OK")
</pallas_src>

<mosaic_0001>
module attributes {stable_mosaic.version = 11 : i64} {
  func.func @_focal_loss_kernel(%arg0: i32, %arg1: i32, %arg2: memref<1x3x8x128xf32, #tpu.memory_space<vmem>>, %arg3: memref<1x8x128xi32, #tpu.memory_space<vmem>>, %arg4: memref<8x128xf32, #tpu.memory_space<vmem>>) attributes {dimension_semantics = [#tpu.dimension_semantics<parallel>, #tpu.dimension_semantics<parallel>], iteration_bounds = array<i64: 2, 1>, scalar_prefetch = 0 : i64, scratch_operands = 0 : i64, tpu.core_type = #tpu.core_type<tc>, window_params = [{transform_indices = @transform_0, window_bounds = array<i64: 1, 3, 8, 128>}, {transform_indices = @transform_1, window_bounds = array<i64: 1, 8, 128>}, {transform_indices = @transform_2, window_bounds = array<i64: 8, 128>}]} {
    %c0 = arith.constant 0 : index
    %c0_0 = arith.constant 0 : index
    %c0_1 = arith.constant 0 : index
    %0 = vector.load %arg3[%c0, %c0_0, %c0_1] : memref<1x8x128xi32, #tpu.memory_space<vmem>>, vector<1x8x128xi32>
    %1 = vector.shape_cast %0 : vector<1x8x128xi32> to vector<8x128xi32>
    %c0_2 = arith.constant 0 : index
    %c0_3 = arith.constant 0 : index
    %c0_4 = arith.constant 0 : index
    %c0_5 = arith.constant 0 : index
    %2 = vector.load %arg2[%c0_2, %c0_3, %c0_4, %c0_5] : memref<1x3x8x128xf32, #tpu.memory_space<vmem>>, vector<1x1x8x128xf32>
    %3 = vector.shape_cast %2 : vector<1x1x8x128xf32> to vector<8x128xf32>
    %c0_6 = arith.constant 0 : index
    %c1 = arith.constant 1 : index
    %c0_7 = arith.constant 0 : index
    %c0_8 = arith.constant 0 : index
    %4 = vector.load %arg2[%c0_6, %c1, %c0_7, %c0_8] : memref<1x3x8x128xf32, #tpu.memory_space<vmem>>, vector<1x1x8x128xf32>
    %5 = vector.shape_cast %4 : vector<1x1x8x128xf32> to vector<8x128xf32>
    %c0_9 = arith.constant 0 : index
    %c2 = arith.constant 2 : index
    %c0_10 = arith.constant 0 : index
    %c0_11 = arith.constant 0 : index
    %6 = vector.load %arg2[%c0_9, %c2, %c0_10, %c0_11] : memref<1x3x8x128xf32, #tpu.memory_space<vmem>>, vector<1x1x8x128xf32>
    %7 = vector.shape_cast %6 : vector<1x1x8x128xf32> to vector<8x128xf32>
    %8 = arith.maximumf %3, %5 : vector<8x128xf32>
    %9 = arith.maximumf %8, %7 : vector<8x128xf32>
    %10 = arith.subf %3, %9 : vector<8x128xf32>
    %11 = math.exp %10 : vector<8x128xf32>
    %12 = arith.subf %5, %9 : vector<8x128xf32>
    %13 = math.exp %12 : vector<8x128xf32>
    %14 = arith.subf %7, %9 : vector<8x128xf32>
    %15 = math.exp %14 : vector<8x128xf32>
    %16 = arith.addf %11, %13 : vector<8x128xf32>
    %17 = arith.addf %16, %15 : vector<8x128xf32>
    %c1_i32 = arith.constant 1 : i32
    %18 = vector.broadcast %c1_i32 : i32 to vector<8x128xi32>
    %19 = arith.cmpi eq, %1, %18 : vector<8x128xi32>
    %20 = arith.select %19, %13, %11 : vector<8x128xi1>, vector<8x128xf32>
    %c2_i32 = arith.constant 2 : i32
    %21 = vector.broadcast %c2_i32 : i32 to vector<8x128xi32>
    %22 = arith.cmpi eq, %1, %21 : vector<8x128xi32>
    %23 = arith.select %22, %15, %20 : vector<8x128xi1>, vector<8x128xf32>
    %24 = arith.divf %23, %17 : vector<8x128xf32>
    %cst = arith.constant 1.000000e-07 : f32
    %cst_12 = arith.constant 0.99999988 : f32
    %25 = vector.broadcast %cst : f32 to vector<8x128xf32>
    %26 = arith.maximumf %25, %24 : vector<8x128xf32>
    %27 = vector.broadcast %cst_12 : f32 to vector<8x128xf32>
    %28 = arith.minimumf %27, %26 : vector<8x128xf32>
    %29 = math.log %28 : vector<8x128xf32>
    %cst_13 = arith.constant 0.000000e+00 : f32
    %30 = vector.broadcast %cst_13 : f32 to vector<8x128xf32>
    %31 = arith.subf %30, %29 : vector<8x128xf32>
    %cst_14 = arith.constant 1.000000e+00 : f32
    %32 = vector.broadcast %cst_14 : f32 to vector<8x128xf32>
    %33 = arith.subf %32, %28 : vector<8x128xf32>
    %34 = arith.mulf %33, %33 : vector<8x128xf32>
    %cst_15 = arith.constant 2.500000e-01 : f32
    %35 = vector.broadcast %cst_15 : f32 to vector<8x128xf32>
    %36 = arith.mulf %35, %34 : vector<8x128xf32>
    %37 = arith.mulf %36, %31 : vector<8x128xf32>
    %c0_i32 = arith.constant 0 : i32
    %38 = vector.broadcast %c0_i32 : i32 to vector<8x128xi32>
    %39 = arith.cmpi sge, %1, %38 : vector<8x128xi32>
    %cst_16 = arith.constant 0.000000e+00 : f32
    %40 = vector.broadcast %cst_16 : f32 to vector<8x128xf32>
    %41 = arith.select %39, %37, %40 : vector<8x128xi1>, vector<8x128xf32>
    %42 = vector.shape_cast %41 : vector<8x128xf32> to vector<1x8x128xf32>
    %cst_17 = arith.constant dense<0.000000e+00> : vector<8x128xf32>
    %43 = vector.multi_reduction <add>, %42, %cst_17 [0] : vector<1x8x128xf32> to vector<8x128xf32>
    %c0_18 = arith.constant 0 : index
    %c0_19 = arith.constant 0 : index
    %44 = vector.load %arg4[%c0_18, %c0_19] : memref<8x128xf32, #tpu.memory_space<vmem>>, vector<8x128xf32>
    tpu.vector_store %arg4[%c0_18, %c0_19], %43 {strides = array<i32>} : memref<8x128xf32, #tpu.memory_space<vmem>>, vector<8x128xf32>,
    return
  }
  func.func @transform_0(%arg0: i32, %arg1: i32) -> (i32, i32, i32, i32) {
    %c0_i32 = arith.constant 0 : i32
    %c0_i32_0 = arith.constant 0 : i32
    %c0_i32_1 = arith.constant 0 : i32
    return %arg0, %c0_i32, %arg1, %c0_i32_0 : i32, i32, i32, i32
  }
  func.func @transform_1(%arg0: i32, %arg1: i32) -> (i32, i32, i32) {
    %c0_i32 = arith.constant 0 : i32
    %c0_i32_0 = arith.constant 0 : i32
    return %arg0, %arg1, %c0_i32 : i32, i32, i32
  }
  func.func @transform_2(%arg0: i32, %arg1: i32) -> (i32, i32) {
    %c1_i32 = arith.constant 1 : i32
    %0 = arith.muli %arg0, %c1_i32 : i32
    %1 = arith.addi %0, %arg1 : i32
    %c0_i32 = arith.constant 0 : i32
    %c0_i32_0 = arith.constant 0 : i32
    return %c0_i32, %1 : i32, i32
  }
}

</mosaic_0001>

<llo_original>
// kernel: tpu_custom_call.1
$region0: #{tpu_custom_call.1}
  #allocation0 [shape = 'u32[]', space=smem, size = 0x4, offset = 0x4, fixed_abs, tag = 'smem constant byte address 0x4 - core index']
  #allocation1 [shape = 'u32[144,128]{1,0:T(1,128)}', space=vmem, size = 0x12000, scoped, tag = 'internal scratch']
  %s0 = inlined_call_operand.hbm [shape: f32[2,3,8,128], index: 0, kind: input, shape index: {}]
  %s1 = inlined_call_operand.hbm [shape: s32[2,8,128], index: 1, kind: input, shape index: {}]
  %s2 = inlined_call_operand.hbm [shape: f32[8,256], index: 2, kind: output, shape index: {}]
  %s3 = sld [smem:[#allocation0]]
  $region49: #{tpu_custom_call.1} parent=0
    _
  %s5 = ssub.s32 1, %s3
  %s6 = scalar_select 0, %s5, %s3
  $region1: #{tpu_custom_call.1} parent=0
    #allocation2 [shape = 'u8[24576]{0}', space=vmem, size = 0x6000, scoped, tag = 'input window, operand 0']
    #allocation3 [shape = 's32[2]{0}', space=sflag, size = 0x8, scoped, tag = 'scoped memory for tpu_custom_call.1']
    #allocation4 [shape = 's32[2]{0}', space=sflag, size = 0x8, scoped, tag = 'scoped memory for tpu_custom_call.1']
    #allocation5 [shape = 'u8[8192]{0}', space=vmem, size = 0x2000, scoped, tag = 'input window, operand 1']
    #allocation6 [shape = 's32[2]{0}', space=sflag, size = 0x8, scoped, tag = 'scoped memory for tpu_custom_call.1']
    #allocation7 [shape = 'u8[8192]{0}', space=vmem, size = 0x2000, scoped, tag = 'output window, operand 0']
    %7 = vsyncpa [#allocation3], 0
    %s8 = scalar_lea.sflag [#allocation3], 1
    %9 = vsyncpa %s8, 0
    %10 = vsyncpa [#allocation6], 0
    %s11 = scalar_lea.sflag [#allocation6], 1
    %12 = vsyncpa %s11, 0
    %13 = vsyncpa [#allocation4], 0
    %s14 = scalar_lea.sflag [#allocation4], 1
    %15 = vsyncpa %s14, 0
    loop: start=0, step=1, limit=4
    $region2: #{tpu_custom_call.1} parent=1 // loop_pre_header
      _
    $region3: #{tpu_custom_call.1} parent=1 // loop_header
      %s17 = sphi 0, %s21
      %p18 = scmp.ge.s32.totalorder %s17, 4
      %s24 = sphi 0, %s36
      %s25 = sphi 0, %s32
      %s26 = sphi 0, %s24
      %s27 = sphi 0, %s25
      %s28 = sphi 0, %s26
      %s29 = sphi 0, %s27
      %s41 = sphi 0, %s43
      %s44 = sphi 0, %s41
      %s45 = sphi 0, %s44
      %s61 = sphi 0, %s45
      %s69 = sphi 0, %s71
      %s72 = sphi 0, %s69
      %s73 = sphi 0, %s72
      %s89 = sphi 0, %s73
      %s97 = sphi 0, %s99
      %s100 = sphi 0, %s97
      %s101 = sphi 0, %s100
      %s117 = sphi 0, %s101
    $region4: #{tpu_custom_call.1} parent=1 // loop_header_branch
      %20 = sbr.rel (%p18) target = $region8
    $region5: #{tpu_custom_call.1} parent=1 // loop_body
      %s22 = ssub.s32 %s17, 1
      %s23 = ssub.s32 %s17, 2
      %s30 = sadd.s32 1, %s25
      %p31 = scmp.ge.s32.totalorder %s30, 1
      %s32 = scalar_select %p31, 0, %s30
      %s33 = sadd.s32 1, %s24
      %s34 = scalar_select %p31, %s33, %s24
      %p35 = scmp.ge.s32.totalorder %s34, 2
      %s36 = scalar_select %p35, 0, %s34
      %s37 = ssub.s32 %s24, %s36
      %s38 = ssub.s32 %s25, %s32
      %s39 = sor.u32 %s37, %s38
      %p40 = scmp.eq.s32.totalorder %s39, 0
      %s42 = sadd.s32 %s41, 1
      %s43 = scalar_select %p40, %s41, %s42
      %p46 = pneg %p40
      %p47 = scmp.eq.s32.totalorder %s17, 1
      %p48 = por %p46, %p47
      %p49 = scmp.ne.s32.totalorder %s41, %s44
      %p50 = scmp.eq.s32.totalorder %s17, 0
      %p51 = por %p49, %p50
      %p52 = scmp.ne.s32.totalorder %s41, %s44
      %p53 = scmp.eq.s32.totalorder %s22, 1
      %p54 = por %p52, %p53
      %p55 = scmp.ne.s32.totalorder %s44, %s45
      %p56 = scmp.eq.s32.totalorder %s22, 0
      %p57 = por %p55, %p56
      %p58 = scmp.ne.s32.totalorder %s44, %s45
      %p59 = scmp.eq.s32.totalorder %s23, 1
      %p60 = por %p58, %p59
      %p62 = scmp.ne.s32.totalorder %s45, %s61
      %p63 = scmp.eq.s32.totalorder %s23, 0
      %p64 = por %p62, %p63
      %s65 = ssub.s32 %s24, %s36
      %s66 = ssub.s32 %s25, %s32
      %s67 = sor.u32 %s65, %s66
      %p68 = scmp.eq.s32.totalorder %s67, 0
      %s70 = sadd.s32 %s69, 1
      %s71 = scalar_select %p68, %s69, %s70
      %p74 = pneg %p68
      %p75 = scmp.eq.s32.totalorder %s17, 1
      %p76 = por %p74, %p75
      %p77 = scmp.ne.s32.totalorder %s69, %s72
      %p78 = scmp.eq.s32.totalorder %s17, 0
      %p79 = por %p77, %p78
      %p80 = scmp.ne.s32.totalorder %s69, %s72
      %p81 = scmp.eq.s32.totalorder %s22, 1
      %p82 = por %p80, %p81
      %p83 = scmp.ne.s32.totalorder %s72, %s73
      %p84 = scmp.eq.s32.totalorder %s22, 0
      %p85 = por %p83, %p84
      %p86 = scmp.ne.s32.totalorder %s72, %s73
      %p87 = scmp.eq.s32.totalorder %s23, 1
      %p88 = por %p86, %p87
      %p90 = scmp.ne.s32.totalorder %s73, %s89
      %p91 = scmp.eq.s32.totalorder %s23, 0
      %p92 = por %p90, %p91
      %s93 = sadd.s32 %s24, %s25
      %s94 = sadd.s32 %s36, %s32
      %s95 = ssub.s32 %s93, %s94
      %p96 = scmp.eq.s32.totalorder %s95, 0
      %s98 = sadd.s32 %s97, 1
      %s99 = scalar_select %p96, %s97, %s98
      %p102 = pneg %p96
      %p103 = scmp.eq.s32.totalorder %s17, 1
      %p104 = por %p102, %p103
      %p105 = scmp.ne.s32.totalorder %s97, %s100
      %p106 = scmp.eq.s32.totalorder %s17, 0
      %p107 = por %p105, %p106
      %p108 = scmp.ne.s32.totalorder %s97, %s100
      %p109 = scmp.eq.s32.totalorder %s22, 1
      %p110 = por %p108, %p109
      %p111 = scmp.ne.s32.totalorder %s100, %s101
      %p112 = scmp.eq.s32.totalorder %s22, 0
      %p113 = por %p111, %p112
      %p114 = scmp.ne.s32.totalorder %s100, %s101
      %p115 = scmp.eq.s32.totalorder %s23, 1
      %p116 = por %p114, %p115
      %p118 = scmp.ne.s32.totalorder %s101, %s117
      %p119 = scmp.eq.s32.totalorder %s23, 0
      %p120 = por %p118, %p119
      %p121 = scmp.le.s32.totalorder 1, %s17
      %p122 = scmp.lt.s32.totalorder %s17, 3
      %p123 = pnand %p121, %p122
      %p124 = pneg %p123
      // Predicated region
      $region9: #{tpu_custom_call.1} parent=5 // pred_check
        _
      $region10: #{tpu_custom_call.1} parent=5 // pred_check_branch
        %126 = sbr.rel (%p123) target = $region12
      $region11: #{tpu_custom_call.1} parent=5 // pred_region
        %s127 = ssub.s32 %s17, 1
      $region12: #{tpu_custom_call.1} parent=5 // pred_fallthru
        _
      %p128 = scmp.lt.s32.totalorder %s17, 2
      // Predicated region
      $region13: #{tpu_custom_call.1} parent=5 // pred_check
        %p129 = pneg %p128
      $region14: #{tpu_custom_call.1} parent=5 // pred_check_branch
        %131 = sbr.rel (%p129) target = $region16
      $region15: #{tpu_custom_call.1} parent=5 // pred_region
        // Predicated region
        $region17: #{tpu_custom_call.1} parent=15 // pred_check
          %p132 = pneg %p51
        $region18: #{tpu_custom_call.1} parent=15 // pred_check_branch
          %134 = sbr.rel (%p132) target = $region20
        $region19: #{tpu_custom_call.1} parent=15 // pred_region
          %s135 = sand.u32 %s41, 1
          %s136 = scalar_lea.sflag [#allocation3], %s135
          %s137 = sand.u32 %s41, 1
          %s138 = smul.addr %s137, 24
          %s139 = scalar_lea.vmem [#allocation2], %s138
          %s141 = ssub.s32 384, 384
          %142 = vsyncadd %s136, %s141
          %s143 = smul.addr %s24, 3
          %s144 = sadd.s32 %s25, %s143
          %s145 = smul.addr %s144, 128
          %s146 = scalar_lea.hbm %s0, %s145
          %s147 = sshll.u32 %s139, 4
          %s148 = int_to_ptr.vmem [resolvable:$true] %s147
          %153 = dma.hbm_to_vmem [thread:$0]  %s146, 384, %s148, %s136, 128, 128, 8
        $region20: #{tpu_custom_call.1} parent=15 // pred_fallthru
          _
        // Predicated region
        $region21: #{tpu_custom_call.1} parent=15 // pred_check
          %p154 = pneg %p79
        $region22: #{tpu_custom_call.1} parent=15 // pred_check_branch
          %156 = sbr.rel (%p154) target = $region24
        $region23: #{tpu_custom_call.1} parent=15 // pred_region
          %s157 = sand.u32 %s69, 1
          %s158 = scalar_lea.sflag [#allocation6], %s157
          %s159 = sand.u32 %s69, 1
          %s160 = smul.addr %s159, 8
          %s161 = scalar_lea.vmem [#allocation5], %s160
          %s163 = ssub.s32 128, 128
          %164 = vsyncadd %s158, %s163
          %s165 = sadd.s32 %s25, %s24
          %s166 = smul.addr %s165, 128
          %s167 = scalar_lea.hbm %s1, %s166
          %s169 = sshll.u32 %s161, 4
          %s170 = int_to_ptr.vmem [resolvable:$true] %s169
          %172 = dma.hbm_to_vmem [thread:$0]  %s167, 128, %s170, %s158
        $region24: #{tpu_custom_call.1} parent=15 // pred_fallthru
          _
      $region16: #{tpu_custom_call.1} parent=5 // pred_fallthru
        _
      %p173 = scmp.le.s32.totalorder 1, %s17
      %p174 = scmp.lt.s32.totalorder %s17, 3
      %p175 = pnand %p173, %p174
      %p176 = pneg %p175
      // Predicated region
      $region25: #{tpu_custom_call.1} parent=5 // pred_check
        _
      $region26: #{tpu_custom_call.1} parent=5 // pred_check_branch
        %178 = sbr.rel (%p175) target = $region28
      $region27: #{tpu_custom_call.1} parent=5 // pred_region
        %s179 = ssub.s32 %s17, 1
        %s180 = sand.u32 %s44, 1
        %s181 = scalar_lea.sflag [#allocation3], %s180
        %s182 = sand.u32 %s44, 1
        %s183 = smul.addr %s182, 24
        %s184 = scalar_lea.vmem [#allocation2], %s183
        // Predicated region
        $region29: #{tpu_custom_call.1} parent=27 // pred_check
          %p185 = pneg %p57
        $region30: #{tpu_custom_call.1} parent=27 // pred_check_branch
          %187 = sbr.rel (%p185) target = $region32
        $region31: #{tpu_custom_call.1} parent=27 // pred_region
          %188 = dma.done %s181, 384
        $region32: #{tpu_custom_call.1} parent=27 // pred_fallthru
          _
        %s189 = sand.u32 %s72, 1
        %s190 = scalar_lea.sflag [#allocation6], %s189
        %s191 = sand.u32 %s72, 1
        %s192 = smul.addr %s191, 8
        %s193 = scalar_lea.vmem [#allocation5], %s192
        // Predicated region
        $region33: #{tpu_custom_call.1} parent=27 // pred_check
          %p194 = pneg %p85
        $region34: #{tpu_custom_call.1} parent=27 // pred_check_branch
          %196 = sbr.rel (%p194) target = $region36
        $region35: #{tpu_custom_call.1} parent=27 // pred_region
          %197 = dma.done %s190, 128
        $region36: #{tpu_custom_call.1} parent=27 // pred_fallthru
          _
        %s198 = sand.u32 %s44, 1
        %s199 = scalar_lea.sflag [#allocation3], %s198
        %s200 = sand.u32 %s44, 1
        %s201 = smul.addr %s200, 24
        %s202 = scalar_lea.vmem [#allocation2], %s201
        %p203 = pneg %p57
        %p204 = pneg %p54
        %s205 = sand.u32 %s72, 1
        %s206 = scalar_lea.sflag [#allocation6], %s205
        %s207 = sand.u32 %s72, 1
        %s208 = smul.addr %s207, 8
        %s209 = scalar_lea.vmem [#allocation5], %s208
        %p210 = pneg %p85
        %p211 = pneg %p82
        %p212 = pneg %p113
        %p213 = pneg %p110
        %s214 = sand.u32 %s100, 1
        %s215 = scalar_lea.sflag [#allocation4], %s214
        %s216 = sand.u32 %s100, 1
        %s217 = smul.addr %s216, 8
        %s218 = scalar_lea.vmem [#allocation7], %s217
        %s219 = sadd.s32 %s26, %s27
        %v220 = vld [vmem:[%s193] sm:$0xff]
        %v221 = vld [vmem:[%s184] sm:$0xff]
        %s222 = scalar_lea.vmem %s184, 8 [#allocation2]
        %v223 = vld [vmem:[%s222] sm:$0xff]
        %s224 = scalar_lea.vmem %s184, 16 [#allocation2]
        %v225 = vld [vmem:[%s224] sm:$0xff]
        %v226 = vmax.f32 %v221, %v223
        %v227 = vmax.f32 %v226, %v225
        %v228 = vsub.f32 %v221, %v227
        %v229 = vmul.f32 %v228, 1.442695
        %v230 = vpow.pop %v229
        %v231 = vsub.f32 %v223, %v227
        %v232 = vmul.f32 %v231, 1.442695
        %v233 = vpow.pop %v232
        %v234 = vsub.f32 %v225, %v227
        %v235 = vmul.f32 %v234, 1.442695
        %v236 = vpow.pop %v235
        %v237 = vadd.f32 %v230, %v233
        %v238 = vadd.f32 %v237, %v236
        %vm239 = vcmp.eq.s32.totalorder %v220, 1
        %v240 = vsel %vm239, %v233, %v230
        %vm241 = vcmp.eq.s32.totalorder %v220, 2
        %v242 = vsel %vm241, %v236, %v240
        %v243 = vrcp.pop %v238
        %v244 = vmul.f32 %v242, %v243
        %v245 = vmax.f32 %v244, 1e-07
        %v246 = vmin.f32 %v245, 0.9999999
        %v247 = vlog2.pop %v246
        %v248 = vmul.f32 %v247, 0.6931472
        %v249 = vsub.f32 0.0, %v248
        %v250 = vsub.f32 1.0, %v246
        %v251 = vmul.f32 %v250, %v250
        %v252 = vmul.f32 %v251, 0.25
        %v253 = vmul.f32 %v252, %v249
        %vm254 = vcmp.ge.s32.totalorder %v220, 0
        %v255 = vsel %vm254, %v253, 0.0
        %v256 = vadd.f32 %v255, 0.0
        %257 = vst [vmem:[%s218] sm:$0xff] %v256
        %s258 = sand.u32 %s100, 1
        %s259 = scalar_lea.sflag [#allocation4], %s258
        %s260 = sand.u32 %s100, 1
        %s261 = smul.addr %s260, 8
        %s262 = scalar_lea.vmem [#allocation7], %s261
        // Predicated region
        $region37: #{tpu_custom_call.1} parent=27 // pred_check
          %p263 = pneg %p110
        $region38: #{tpu_custom_call.1} parent=27 // pred_check_branch
          %265 = sbr.rel (%p263) target = $region40
        $region39: #{tpu_custom_call.1} parent=27 // pred_region
          %s266 = sadd.s32 %s26, %s27
          %s268 = ssub.s32 128, 128
          %269 = vsyncadd %s259, %s268
          %s270 = smul.addr %s266, 128
          %s271 = scalar_lea.hbm %s2, %s270
          %s273 = sshll.u32 %s262, 4
          %s274 = int_to_ptr.vmem [resolvable:$true] %s273
          %276 = dma.vmem_to_hbm [thread:$0]  %s274, 128, %s271, %s259
        $region40: #{tpu_custom_call.1} parent=27 // pred_fallthru
          _
      $region28: #{tpu_custom_call.1} parent=5 // pred_fallthru
        _
      %p277 = scmp.le.s32.totalorder 2, %s17
      // Predicated region
      $region41: #{tpu_custom_call.1} parent=5 // pred_check
        %p278 = pneg %p277
      $region42: #{tpu_custom_call.1} parent=5 // pred_check_branch
        %280 = sbr.rel (%p278) target = $region44
      $region43: #{tpu_custom_call.1} parent=5 // pred_region
        %s281 = ssub.s32 %s17, 2
        // Predicated region
        $region45: #{tpu_custom_call.1} parent=43 // pred_check
          %p282 = pneg %p116
        $region46: #{tpu_custom_call.1} parent=43 // pred_check_branch
          %284 = sbr.rel (%p282) target = $region48
        $region47: #{tpu_custom_call.1} parent=43 // pred_region
          %s285 = sand.u32 %s101, 1
          %s286 = scalar_lea.sflag [#allocation4], %s285
          %s287 = sand.u32 %s101, 1
          %s288 = smul.addr %s287, 8
          %s289 = scalar_lea.vmem [#allocation7], %s288
          %290 = dma.done %s286, 128
        $region48: #{tpu_custom_call.1} parent=43 // pred_fallthru
          _
      $region44: #{tpu_custom_call.1} parent=5 // pred_fallthru
        _
    $region6: #{tpu_custom_call.1} parent=1 // loop_footer
      %s21 = sadd.s32 1, %s17
    $region7: #{tpu_custom_call.1} parent=1 // loop_footer_branch
      %16 = sbr.rel target = $region3
    $region8: #{tpu_custom_call.1} parent=1 // loop_exit
      _
    %291 = vsyncpa [#allocation3], 1
    %s292 = scalar_lea.sflag [#allocation3], 1
    %293 = vsyncpa %s292, 1
    %294 = vsyncpa [#allocation6], 1
    %s295 = scalar_lea.sflag [#allocation6], 1
    %296 = vsyncpa %s295, 1
    %297 = vsyncpa [#allocation4], 1
    %s298 = scalar_lea.sflag [#allocation4], 1
    %299 = vsyncpa %s298, 1

</llo_original>
